<compile_context>
chip_gen: v5e
topology: v5e:2x2
jax: 0.10.0
libtpu: 0.0.40
codegen_flags: <defaults>
</compile_context>

<pallas_src>
import functools

import jax
import jax.numpy as jnp
from jax import lax
from jax.experimental import pallas as pl
from jax.experimental.pallas import tpu as pltpu

_LANE = 128      # TPU lane width -> pad out_feats up to a multiple of this
_TN = 128        # node tile for the projection kernel
_TD = 128        # destination-node tile for the aggregation kernel
_TS = 128        # source-node tile for the aggregation kernel
_CHUNK = 8       # sublane-width chunk for the vectorized masked max


def _round_up(x, m):
  return (x + m - 1) // m * m


def _proj_kernel(feat_ref, wcat_ref, ci_ref, cj_ref, hmask_ref,
                 msg_ref, attn_ref, *, out_p, out_feats):
  """Per-node work: fused projections, messages and attention weights."""
  # One fused bf16 MXU matmul for [W | Wk] (each half zero-padded to out_p).
  y = jnp.dot(feat_ref[...], wcat_ref[...],
              preferred_element_type=jnp.float32)            # [Tn, 2*out_p]
  h = y[:, :out_p]
  wk = y[:, out_p:]

  # msg = relu(h * cj)   (dropout_rate == 0 -> identity)
  msg_ref[...] = jnp.maximum(h * cj_ref[...], 0.0)

  # alpha = |normalize(q)*normalize(q)| with q = wk*ci, per head:
  #   alpha = q^2 / max(sum_head(q^2), eps^2)    (== F.normalize with eps=1e-12)
  # hmask is the block-diagonal same-head selector, pre-scaled by Tau on the
  # host, so the /Tau of the softmax logits is folded into this matmul.
  q = wk * ci_ref[...]
  sq = q * q
  head_sumsq = jnp.dot(sq, hmask_ref[...],
                       preferred_element_type=jnp.float32)   # [Tn, out_p]
  logits = sq * pl.reciprocal(jnp.maximum(head_sumsq, 1e-24), approx=True)

  # softmax over the real out_feats lanes only (padded lanes masked out).
  lane = lax.broadcasted_iota(jnp.int32, logits.shape, 1)
  logits = jnp.where(lane < out_feats, logits, -1e30)
  mx = jnp.max(logits, axis=1, keepdims=True)
  e = jnp.exp(logits - mx)
  attn_ref[...] = e * pl.reciprocal(jnp.sum(e, axis=1, keepdims=True),
                                    approx=True)


def _agg_kernel(adjt_ref, msg_ref, attn_ref, out_ref, rst_ref, *, src_tile):
  """Masked max aggregation over the graph, tiled (dst, src)."""
  s_id = pl.program_id(1)

  @pl.when(s_id == 0)
  def _init():
    rst_ref[...] = jnp.zeros_like(rst_ref)

  # adj_t[src, dst] in {0,1}; msg >= 0 (relu), so masked max with fill 0 is
  # exact:  rst[i, f] = max_j adj_t[j, i] * msg[j, f]
  # (0 for zero-degree dst nodes -- the DGL default fill).
  adjt = adjt_ref[...].astype(jnp.float32)       # [Ts, Td]  (int8 in HBM)
  msg = msg_ref[...]                             # [Ts, out_p]

  def chunk_body(c, rst):
    off = pl.multiple_of(c * _CHUNK, _CHUNK)
    a = lax.dynamic_slice_in_dim(adjt, off, _CHUNK, axis=0)   # [8, Td]
    m = lax.dynamic_slice_in_dim(msg, off, _CHUNK, axis=0)    # [8, out_p]
    cand = a[:, :, None] * m[:, None, :]                      # [8, Td, out_p]
    return jnp.maximum(rst, jnp.max(cand, axis=0))

  rst_ref[...] = lax.fori_loop(0, src_tile // _CHUNK, chunk_body,
                               rst_ref[...], unroll=True)

  @pl.when(s_id == pl.num_programs(1) - 1)
  def _finalize():
    out_ref[...] = rst_ref[...] * attn_ref[...]


def hgat_link_conv(feat, weight, weight_k, ci, cj, adj, *, heads, d_k,
                   tau=0.25):
  """HGATLinkConv forward.  adj[dst, src] dense {0,1}; ci/cj per-node scalars."""
  n, in_feats = feat.shape
  out_feats = weight.shape[1]
  assert out_feats == heads * d_k

  out_p = _round_up(out_feats, _LANE)
  n_p = _round_up(n, max(_TN, _TD, _TS))

  # ---- host-side prep -------------------------------------------------------
  # Fused, zero-padded projection weights; bf16 for the MXU inputs (all
  # post-matmul elementwise math stays f32, important on v5e).
  w_pad = jnp.zeros((in_feats, out_p), jnp.float32).at[:, :out_feats].set(weight)
  wk_pad = jnp.zeros((in_feats, out_p), jnp.float32).at[:, :out_feats].set(weight_k)
  w_cat = jnp.concatenate([w_pad, wk_pad], axis=1).astype(jnp.bfloat16)
  feat_p = jnp.zeros((n_p, in_feats), jnp.bfloat16).at[:n, :].set(
      feat.astype(jnp.bfloat16))

  ci_p = jnp.zeros((n_p, 1), jnp.float32).at[:n, :].set(jnp.reshape(ci, (n, 1)))
  cj_p = jnp.zeros((n_p, 1), jnp.float32).at[:n, :].set(jnp.reshape(cj, (n, 1)))

  # Block-diagonal same-head selector, with Tau folded in (hmask * tau so the
  # subsequent reciprocal yields alpha / tau directly).
  fidx = jnp.arange(out_p) // d_k
  hmask = (fidx[:, None] == fidx[None, :]).astype(jnp.float32) * tau

  # Transposed int8 adjacency: adj_t[src, dst] -> 4x less HBM traffic than f32,
  # and the per-chunk src slices become clean sublane slices.
  adj_t = jnp.zeros((n_p, n_p), jnp.int8).at[:n, :n].set(
      (adj.T != 0).astype(jnp.int8))

  # ---- pass 1: per-node projections, messages, attention --------------------
  grid_n = n_p // _TN
  msg, attn = pl.pallas_call(
      functools.partial(_proj_kernel, out_p=out_p, out_feats=out_feats),
      out_shape=(jax.ShapeDtypeStruct((n_p, out_p), jnp.float32),
                 jax.ShapeDtypeStruct((n_p, out_p), jnp.float32)),
      grid_spec=pltpu.PrefetchScalarGridSpec(
          num_scalar_prefetch=0,
          grid=(grid_n,),
          in_specs=[
              pl.BlockSpec((_TN, in_feats), lambda i: (i, 0)),
              pl.BlockSpec((in_feats, 2 * out_p), lambda i: (0, 0)),
              pl.BlockSpec((_TN, 1), lambda i: (i, 0)),
              pl.BlockSpec((_TN, 1), lambda i: (i, 0)),
              pl.BlockSpec((out_p, out_p), lambda i: (0, 0)),
          ],
          out_specs=(
              pl.BlockSpec((_TN, out_p), lambda i: (i, 0)),
              pl.BlockSpec((_TN, out_p), lambda i: (i, 0)),
          ),
      ),
      compiler_params=pltpu.CompilerParams(
          dimension_semantics=("parallel",),
          vmem_limit_bytes=32 * 1024 * 1024),
  )(feat_p, w_cat, ci_p, cj_p, hmask)

  # ---- pass 2: masked max aggregation + attention scaling --------------------
  grid_d = n_p // _TD
  grid_s = n_p // _TS
  out_full = pl.pallas_call(
      functools.partial(_agg_kernel, src_tile=_TS),
      out_shape=jax.ShapeDtypeStruct((n_p, out_p), jnp.float32),
      grid_spec=pltpu.PrefetchScalarGridSpec(
          num_scalar_prefetch=0,
          grid=(grid_d, grid_s),
          in_specs=[
              pl.BlockSpec((_TS, _TD), lambda d, s: (s, d)),      # adj_t tile
              pl.BlockSpec((_TS, out_p), lambda d, s: (s, 0)),    # msg (src)
              pl.BlockSpec((_TD, out_p), lambda d, s: (d, 0)),    # attn (dst)
          ],
          out_specs=pl.BlockSpec((_TD, out_p), lambda d, s: (d, 0)),
          scratch_shapes=[pltpu.VMEM((_TD, out_p), jnp.float32)],
      ),
      compiler_params=pltpu.CompilerParams(
          dimension_semantics=("parallel", "arbitrary"),
          vmem_limit_bytes=32 * 1024 * 1024),
  )(adj_t, msg, attn)

  return out_full[:n, :out_feats]


# ------------------------------- test driver --------------------------------

def xavier_uniform(key, shape):
  fan_in, fan_out = shape
  a = (6.0 / (fan_in + fan_out)) ** 0.5
  return jax.random.uniform(key, shape, jnp.float32, minval=-a, maxval=a)


def _reference(feat, weight, weight_k, ci, cj, adj, heads, d_k):
  """Pure-JAX reference (matmul inputs bf16-rounded like the kernel)."""
  n = feat.shape[0]
  out_feats = weight.shape[1]
  f = feat.astype(jnp.bfloat16).astype(jnp.float32)
  w = weight.astype(jnp.bfloat16).astype(jnp.float32)
  wkw = weight_k.astype(jnp.bfloat16).astype(jnp.float32)
  h = f @ w
  wk = f @ wkw
  q = (wk * jnp.reshape(ci, (n, 1))).reshape(n, heads, d_k)
  qn = q / jnp.maximum(jnp.sqrt(jnp.sum(q * q, axis=-1, keepdims=True)), 1e-12)
  alpha = jnp.abs(qn * qn).reshape(n, out_feats)
  msg = jnp.maximum(h * jnp.reshape(cj, (n, 1)), 0.0)
  cand = jnp.where(adj[:, :, None] != 0, msg[None, :, :], 0.0)
  rst = jnp.max(cand, axis=1)             # 0 for zero-degree dst; msg >= 0
  attn = jax.nn.softmax(alpha / 0.25, axis=1)
  return rst * attn


if __name__ == "__main__":
  # Small synthetic problem consistent with the module's __init__:
  #   in_feats = k_feats = 32, heads = 4, d_k = 8 -> out_feats = 32, N = 200.
  N = 200
  in_feats = 32
  heads = 4
  d_k = 8
  out_feats = heads * d_k

  key = jax.random.PRNGKey(0)
  k_feat, k_w, k_wk, k_adj = jax.random.split(key, 4)

  feat = jax.random.normal(k_feat, (N, in_feats), jnp.float32)
  weight = xavier_uniform(k_w, (in_feats, out_feats))
  weight_k = xavier_uniform(k_wk, (in_feats, out_feats))

  # Dense adjacency (edge j -> i), with self-loops so every node has a neighbor.
  adj = (jax.random.uniform(k_adj, (N, N)) < 0.05).astype(jnp.float32)
  adj = jnp.maximum(adj, jnp.eye(N, dtype=jnp.float32))

  # ci / cj: per-node normalization scalars (1/sqrt(degree)-style), shape [N,1].
  deg_in = jnp.sum(adj, axis=1, keepdims=True)
  deg_out = jnp.sum(adj, axis=0).reshape(N, 1)
  ci = 1.0 / jnp.sqrt(jnp.maximum(deg_in, 1.0))
  cj = 1.0 / jnp.sqrt(jnp.maximum(deg_out, 1.0))

  out = hgat_link_conv(feat, weight, weight_k, ci, cj, adj,
                       heads=heads, d_k=d_k)
  out = jax.block_until_ready(out)
  assert out.shape == (N, out_feats)

  ref = _reference(feat, weight, weight_k, ci, cj, adj, heads, d_k)
  assert bool(jnp.allclose(out, ref, rtol=5e-2, atol=5e-3)), (
      "kernel/reference mismatch: max abs diff = "
      f"{float(jnp.max(jnp.abs(out - ref)))}")
  print("KERNEL_OK")
</pallas_src>

<mosaic_0001>
module attributes {stable_mosaic.version = 11 : i64} {
  func.func @_proj_kernel(%arg0: i32, %arg1: memref<128x32xbf16, #tpu.memory_space<vmem>>, %arg2: memref<32x256xbf16, #tpu.memory_space<vmem>>, %arg3: memref<128x1xf32, #tpu.memory_space<vmem>>, %arg4: memref<128x1xf32, #tpu.memory_space<vmem>>, %arg5: memref<128x128xf32, #tpu.memory_space<vmem>>, %arg6: memref<128x128xf32, #tpu.memory_space<vmem>>, %arg7: memref<128x128xf32, #tpu.memory_space<vmem>>) attributes {dimension_semantics = [#tpu.dimension_semantics<parallel>], iteration_bounds = array<i64: 2>, scalar_prefetch = 0 : i64, scratch_operands = 0 : i64, tpu.core_type = #tpu.core_type<tc>, window_params = [{transform_indices = @transform_0, window_bounds = array<i64: 128, 32>}, {pipeline_mode = #tpu.pipeline_mode<synchronous>, transform_indices = @transform_1, window_bounds = array<i64: 32, 256>}, {transform_indices = @transform_2, window_bounds = array<i64: 128, 1>}, {transform_indices = @transform_3, window_bounds = array<i64: 128, 1>}, {pipeline_mode = #tpu.pipeline_mode<synchronous>, transform_indices = @transform_4, window_bounds = array<i64: 128, 128>}, {transform_indices = @transform_5, window_bounds = array<i64: 128, 128>}, {transform_indices = @transform_6, window_bounds = array<i64: 128, 128>}]} {
    %c0 = arith.constant 0 : index
    %c0_0 = arith.constant 0 : index
    %0 = vector.load %arg1[%c0, %c0_0] : memref<128x32xbf16, #tpu.memory_space<vmem>>, vector<128x32xbf16>
    %c0_1 = arith.constant 0 : index
    %c0_2 = arith.constant 0 : index
    %1 = vector.load %arg2[%c0_1, %c0_2] : memref<32x256xbf16, #tpu.memory_space<vmem>>, vector<32x256xbf16>
    %cst = arith.constant dense<0.000000e+00> : vector<128x256xf32>
    %2 = tpu.matmul %0, %1, %cst {dimension_numbers = #tpu.dot_dimension_numbers<[1], [0], [0], [1], [0, 0, 1, 1], [], []>} : vector<128x32xbf16>, vector<32x256xbf16>, vector<128x256xf32> -> vector<128x256xf32>
    %3 = vector.extract_strided_slice %2 {offsets = [0, 0], sizes = [128, 128], strides = [1, 1]} : vector<128x256xf32> to vector<128x128xf32>
    %4 = vector.extract_strided_slice %2 {offsets = [0, 128], sizes = [128, 128], strides = [1, 1]} : vector<128x256xf32> to vector<128x128xf32>
    %c0_3 = arith.constant 0 : index
    %c0_4 = arith.constant 0 : index
    %5 = vector.load %arg4[%c0_3, %c0_4] : memref<128x1xf32, #tpu.memory_space<vmem>>, vector<128x1xf32>
    %6 = vector.broadcast %5 : vector<128x1xf32> to vector<128x128xf32>
    %7 = arith.mulf %3, %6 : vector<128x128xf32>
    %cst_5 = arith.constant 0.000000e+00 : f32
    %8 = vector.broadcast %cst_5 : f32 to vector<128x128xf32>
    %9 = arith.maximumf %7, %8 : vector<128x128xf32>
    %c0_6 = arith.constant 0 : index
    %c0_7 = arith.constant 0 : index
    %10 = vector.load %arg6[%c0_6, %c0_7] : memref<128x128xf32, #tpu.memory_space<vmem>>, vector<128x128xf32>
    tpu.vector_store %arg6[%c0_6, %c0_7], %9 {strides = array<i32>} : memref<128x128xf32, #tpu.memory_space<vmem>>, vector<128x128xf32>,
    %c0_8 = arith.constant 0 : index
    %c0_9 = arith.constant 0 : index
    %11 = vector.load %arg3[%c0_8, %c0_9] : memref<128x1xf32, #tpu.memory_space<vmem>>, vector<128x1xf32>
    %12 = vector.broadcast %11 : vector<128x1xf32> to vector<128x128xf32>
    %13 = arith.mulf %4, %12 : vector<128x128xf32>
    %14 = arith.mulf %13, %13 : vector<128x128xf32>
    %c0_10 = arith.constant 0 : index
    %c0_11 = arith.constant 0 : index
    %15 = vector.load %arg5[%c0_10, %c0_11] : memref<128x128xf32, #tpu.memory_space<vmem>>, vector<128x128xf32>
    %cst_12 = arith.constant dense<0.000000e+00> : vector<128x128xf32>
    %16 = tpu.matmul %14, %15, %cst_12 {dimension_numbers = #tpu.dot_dimension_numbers<[1], [0], [0], [1], [0, 0, 1, 1], [], []>} : vector<128x128xf32>, vector<128x128xf32>, vector<128x128xf32> -> vector<128x128xf32>
    %cst_13 = arith.constant 1.000000e-24 : f32
    %17 = vector.broadcast %cst_13 : f32 to vector<128x128xf32>
    %18 = arith.maximumf %16, %17 : vector<128x128xf32>
    %19 = tpu.reciprocal %18 {approx = true} : vector<128x128xf32> -> vector<128x128xf32>
    %20 = arith.mulf %14, %19 : vector<128x128xf32>
    %21 = tpu.iota {dimensions = array<i32: 1>} : vector<128x128xi32>
    %c32_i32 = arith.constant 32 : i32
    %22 = vector.broadcast %c32_i32 : i32 to vector<128x128xi32>
    %23 = arith.cmpi slt, %21, %22 : vector<128x128xi32>
    %cst_14 = arith.constant -1.000000e+30 : f32
    %24 = vector.broadcast %cst_14 : f32 to vector<128x128xf32>
    %25 = arith.select %23, %20, %24 : vector<128x128xi1>, vector<128x128xf32>
    %cst_15 = arith.constant dense<0xFF800000> : vector<128xf32>
    %26 = vector.multi_reduction <maximumf>, %25, %cst_15 [1] : vector<128x128xf32> to vector<128xf32>
    %27 = vector.shape_cast %26 : vector<128xf32> to vector<128x1xf32>
    %28 = vector.broadcast %27 : vector<128x1xf32> to vector<128x128xf32>
    %29 = arith.subf %25, %28 : vector<128x128xf32>
    %30 = math.exp %29 : vector<128x128xf32>
    %cst_16 = arith.constant dense<0.000000e+00> : vector<128xf32>
    %31 = vector.multi_reduction <add>, %30, %cst_16 [1] : vector<128x128xf32> to vector<128xf32>
    %32 = vector.shape_cast %31 : vector<128xf32> to vector<128x1xf32>
    %33 = tpu.reciprocal %32 {approx = true} : vector<128x1xf32> -> vector<128x1xf32>
    %34 = vector.broadcast %33 : vector<128x1xf32> to vector<128x128xf32>
    %35 = arith.mulf %30, %34 : vector<128x128xf32>
    %c0_17 = arith.constant 0 : index
    %c0_18 = arith.constant 0 : index
    %36 = vector.load %arg7[%c0_17, %c0_18] : memref<128x128xf32, #tpu.memory_space<vmem>>, vector<128x128xf32>
    tpu.vector_store %arg7[%c0_17, %c0_18], %35 {strides = array<i32>} : memref<128x128xf32, #tpu.memory_space<vmem>>, vector<128x128xf32>,
    return
  }
  func.func @transform_0(%arg0: i32) -> (i32, i32) {
    %c0_i32 = arith.constant 0 : i32
    %c0_i32_0 = arith.constant 0 : i32
    return %arg0, %c0_i32 : i32, i32
  }
  func.func @transform_1(%arg0: i32) -> (i32, i32) {
    %c0_i32 = arith.constant 0 : i32
    %c0_i32_0 = arith.constant 0 : i32
    %c0_i32_1 = arith.constant 0 : i32
    return %c0_i32, %c0_i32_0 : i32, i32
  }
  func.func @transform_2(%arg0: i32) -> (i32, i32) {
    %c0_i32 = arith.constant 0 : i32
    %c0_i32_0 = arith.constant 0 : i32
    return %arg0, %c0_i32 : i32, i32
  }
  func.func @transform_3(%arg0: i32) -> (i32, i32) {
    %c0_i32 = arith.constant 0 : i32
    %c0_i32_0 = arith.constant 0 : i32
    return %arg0, %c0_i32 : i32, i32
  }
  func.func @transform_4(%arg0: i32) -> (i32, i32) {
    %c0_i32 = arith.constant 0 : i32
    %c0_i32_0 = arith.constant 0 : i32
    %c0_i32_1 = arith.constant 0 : i32
    return %c0_i32, %c0_i32_0 : i32, i32
  }
  func.func @transform_5(%arg0: i32) -> (i32, i32) {
    %c0_i32 = arith.constant 0 : i32
    %c0_i32_0 = arith.constant 0 : i32
    return %arg0, %c0_i32 : i32, i32
  }
  func.func @transform_6(%arg0: i32) -> (i32, i32) {
    %c0_i32 = arith.constant 0 : i32
    %c0_i32_0 = arith.constant 0 : i32
    return %arg0, %c0_i32 : i32, i32
  }
}

</mosaic_0001>

<llo_original>
// kernel: tpu_custom_call.1
$region0: #{tpu_custom_call.1}
  #allocation0 [shape = 'u32[]', space=smem, size = 0x4, offset = 0x4, fixed_abs, tag = 'smem constant byte address 0x4 - core index']
  #allocation1 [shape = 'u32[72,128]{1,0:T(1,128)}', space=vmem, size = 0x9000, scoped, tag = 'internal scratch']
  %s0 = inlined_call_operand.vmem [shape: bf16[256,32], index: 0, kind: input, shape index: {}]
  %s1 = inlined_call_operand.vmem [shape: bf16[32,256], index: 1, kind: input, shape index: {}]
  %s2 = inlined_call_operand.vmem [shape: f32[256,1], index: 2, kind: input, shape index: {}]
  %s3 = inlined_call_operand.vmem [shape: f32[256,1], index: 3, kind: input, shape index: {}]
  %s4 = inlined_call_operand.vmem [shape: f32[128,128], index: 4, kind: input, shape index: {}]
  %s5 = inlined_call_operand.hbm [shape: f32[256,128], index: 5, kind: output, shape index: {0}]
  %s6 = inlined_call_operand.hbm [shape: f32[256,128], index: 6, kind: output, shape index: {1}]
  %7 = xla_tuple %s5, %s6
  %s8 = sld [smem:[#allocation0]]
  $region61: #{tpu_custom_call.1} parent=0
    _
  %s10 = ssub.s32 1, %s8
  %s11 = scalar_select 0, %s10, %s8
  $region1: #{tpu_custom_call.1} parent=0
    #allocation2 [shape = 'u8[131072]{0}', space=vmem, size = 0x20000, scoped, tag = 'output window, operand 0']
    #allocation3 [shape = 's32[2]{0}', space=sflag, size = 0x8, scoped, tag = 'scoped memory for tpu_custom_call.1']
    #allocation4 [shape = 'u8[131072]{0}', space=vmem, size = 0x20000, scoped, tag = 'output window, operand 1']
    #allocation5 [shape = 's32[2]{0}', space=sflag, size = 0x8, scoped, tag = 'scoped memory for tpu_custom_call.1']
    %12 = vsyncpa [#allocation3], 0
    %s13 = scalar_lea.sflag [#allocation3], 1
    %14 = vsyncpa %s13, 0
    %15 = vsyncpa [#allocation5], 0
    %s16 = scalar_lea.sflag [#allocation5], 1
    %17 = vsyncpa %s16, 0
    loop: start=0, step=1, limit=4
    $region2: #{tpu_custom_call.1} parent=1 // loop_pre_header
      _
    $region3: #{tpu_custom_call.1} parent=1 // loop_header
      %s19 = sphi 0, %s23
      %p20 = scmp.ge.s32.totalorder %s19, 4
      %s29 = sphi 0, %s31
      %s32 = sphi 0, %s29
      %s33 = sphi 0, %s32
      %s49 = sphi 0, %s33
      %s53 = sphi 0, %s53
      %s55 = sphi 0, %s53
      %s56 = sphi 0, %s55
      %s70 = sphi 0, %s56
      %s76 = sphi 0, %s78
      %s79 = sphi 0, %s76
      %s80 = sphi 0, %s79
      %s96 = sphi 0, %s80
      %s102 = sphi 0, %s104
      %s105 = sphi 0, %s102
      %s106 = sphi 0, %s105
      %s122 = sphi 0, %s106
      %s126 = sphi 0, %s126
      %s128 = sphi 0, %s126
      %s129 = sphi 0, %s128
      %s143 = sphi 0, %s129
      %s149 = sphi 0, %s151
      %s152 = sphi 0, %s149
      %s153 = sphi 0, %s152
      %s169 = sphi 0, %s153
      %s175 = sphi 0, %s177
      %s178 = sphi 0, %s175
      %s179 = sphi 0, %s178
      %s195 = sphi 0, %s179
    $region4: #{tpu_custom_call.1} parent=1 // loop_header_branch
      %22 = sbr.rel (%p20) target = $region8
    $region5: #{tpu_custom_call.1} parent=1 // loop_body
      %s24 = ssub.s32 %s19, 1
      %s25 = ssub.s32 %s19, 2
      %s26 = sadd.s32 %s19, 1
      %s27 = ssub.s32 %s19, %s26
      %p28 = scmp.eq.s32.totalorder %s27, 0
      %s30 = sadd.s32 %s29, 1
      %s31 = scalar_select %p28, %s29, %s30
      %p34 = pneg %p28
      %p35 = scmp.eq.s32.totalorder %s19, 1
      %p36 = por %p34, %p35
      %p37 = scmp.ne.s32.totalorder %s29, %s32
      %p38 = scmp.eq.s32.totalorder %s19, 0
      %p39 = por %p37, %p38
      %p40 = scmp.ne.s32.totalorder %s29, %s32
      %p41 = scmp.eq.s32.totalorder %s24, 1
      %p42 = por %p40, %p41
      %p43 = scmp.ne.s32.totalorder %s32, %s33
      %p44 = scmp.eq.s32.totalorder %s24, 0
      %p45 = por %p43, %p44
      %p46 = scmp.ne.s32.totalorder %s32, %s33
      %p47 = scmp.eq.s32.totalorder %s25, 1
      %p48 = por %p46, %p47
      %p50 = scmp.ne.s32.totalorder %s33, %s49
      %p51 = scmp.eq.s32.totalorder %s25, 0
      %p52 = por %p50, %p51
      %s54 = sadd.s32 %s53, 1
      %p57 = scmp.eq.s32.totalorder %s19, 1
      %p58 = scmp.ne.s32.totalorder %s53, %s55
      %p59 = scmp.eq.s32.totalorder %s19, 0
      %p60 = por %p58, %p59
      %p61 = scmp.ne.s32.totalorder %s53, %s55
      %p62 = scmp.eq.s32.totalorder %s24, 1
      %p63 = por %p61, %p62
      %p64 = scmp.ne.s32.totalorder %s55, %s56
      %p65 = scmp.eq.s32.totalorder %s24, 0
      %p66 = por %p64, %p65
      %p67 = scmp.ne.s32.totalorder %s55, %s56
      %p68 = scmp.eq.s32.totalorder %s25, 1
      %p69 = por %p67, %p68
      %p71 = scmp.ne.s32.totalorder %s56, %s70
      %p72 = scmp.eq.s32.totalorder %s25, 0
      %p73 = por %p71, %p72
      %s74 = ssub.s32 %s19, %s26
      %p75 = scmp.eq.s32.totalorder %s74, 0
      %s77 = sadd.s32 %s76, 1
      %s78 = scalar_select %p75, %s76, %s77
      %p81 = pneg %p75
      %p82 = scmp.eq.s32.totalorder %s19, 1
      %p83 = por %p81, %p82
      %p84 = scmp.ne.s32.totalorder %s76, %s79
      %p85 = scmp.eq.s32.totalorder %s19, 0
      %p86 = por %p84, %p85
      %p87 = scmp.ne.s32.totalorder %s76, %s79
      %p88 = scmp.eq.s32.totalorder %s24, 1
      %p89 = por %p87, %p88
      %p90 = scmp.ne.s32.totalorder %s79, %s80
      %p91 = scmp.eq.s32.totalorder %s24, 0
      %p92 = por %p90, %p91
      %p93 = scmp.ne.s32.totalorder %s79, %s80
      %p94 = scmp.eq.s32.totalorder %s25, 1
      %p95 = por %p93, %p94
      %p97 = scmp.ne.s32.totalorder %s80, %s96
      %p98 = scmp.eq.s32.totalorder %s25, 0
      %p99 = por %p97, %p98
      %s100 = ssub.s32 %s19, %s26
      %p101 = scmp.eq.s32.totalorder %s100, 0
      %s103 = sadd.s32 %s102, 1
      %s104 = scalar_select %p101, %s102, %s103
      %p107 = pneg %p101
      %p108 = scmp.eq.s32.totalorder %s19, 1
      %p109 = por %p107, %p108
      %p110 = scmp.ne.s32.totalorder %s102, %s105
      %p111 = scmp.eq.s32.totalorder %s19, 0
      %p112 = por %p110, %p111
      %p113 = scmp.ne.s32.totalorder %s102, %s105
      %p114 = scmp.eq.s32.totalorder %s24, 1
      %p115 = por %p113, %p114
      %p116 = scmp.ne.s32.totalorder %s105, %s106
      %p117 = scmp.eq.s32.totalorder %s24, 0
      %p118 = por %p116, %p117
      %p119 = scmp.ne.s32.totalorder %s105, %s106
      %p120 = scmp.eq.s32.totalorder %s25, 1
      %p121 = por %p119, %p120
      %p123 = scmp.ne.s32.totalorder %s106, %s122
      %p124 = scmp.eq.s32.totalorder %s25, 0
      %p125 = por %p123, %p124
      %s127 = sadd.s32 %s126, 1
      %p130 = scmp.eq.s32.totalorder %s19, 1
      %p131 = scmp.ne.s32.totalorder %s126, %s128
      %p132 = scmp.eq.s32.totalorder %s19, 0
      %p133 = por %p131, %p132
      %p134 = scmp.ne.s32.totalorder %s126, %s128
      %p135 = scmp.eq.s32.totalorder %s24, 1
      %p136 = por %p134, %p135
      %p137 = scmp.ne.s32.totalorder %s128, %s129
      %p138 = scmp.eq.s32.totalorder %s24, 0
      %p139 = por %p137, %p138
      %p140 = scmp.ne.s32.totalorder %s128, %s129
      %p141 = scmp.eq.s32.totalorder %s25, 1
      %p142 = por %p140, %p141
      %p144 = scmp.ne.s32.totalorder %s129, %s143
      %p145 = scmp.eq.s32.totalorder %s25, 0
      %p146 = por %p144, %p145
      %s147 = ssub.s32 %s19, %s26
      %p148 = scmp.eq.s32.totalorder %s147, 0
      %s150 = sadd.s32 %s149, 1
      %s151 = scalar_select %p148, %s149, %s150
      %p154 = pneg %p148
      %p155 = scmp.eq.s32.totalorder %s19, 1
      %p156 = por %p154, %p155
      %p157 = scmp.ne.s32.totalorder %s149, %s152
      %p158 = scmp.eq.s32.totalorder %s19, 0
      %p159 = por %p157, %p158
      %p160 = scmp.ne.s32.totalorder %s149, %s152
      %p161 = scmp.eq.s32.totalorder %s24, 1
      %p162 = por %p160, %p161
      %p163 = scmp.ne.s32.totalorder %s152, %s153
      %p164 = scmp.eq.s32.totalorder %s24, 0
      %p165 = por %p163, %p164
      %p166 = scmp.ne.s32.totalorder %s152, %s153
      %p167 = scmp.eq.s32.totalorder %s25, 1
      %p168 = por %p166, %p167
      %p170 = scmp.ne.s32.totalorder %s153, %s169
      %p171 = scmp.eq.s32.totalorder %s25, 0
      %p172 = por %p170, %p171
      %s173 = ssub.s32 %s19, %s26
      %p174 = scmp.eq.s32.totalorder %s173, 0
      %s176 = sadd.s32 %s175, 1
      %s177 = scalar_select %p174, %s175, %s176
      %p180 = pneg %p174
      %p181 = scmp.eq.s32.totalorder %s19, 1
      %p182 = por %p180, %p181
      %p183 = scmp.ne.s32.totalorder %s175, %s178
      %p184 = scmp.eq.s32.totalorder %s19, 0
      %p185 = por %p183, %p184
      %p186 = scmp.ne.s32.totalorder %s175, %s178
      %p187 = scmp.eq.s32.totalorder %s24, 1
      %p188 = por %p186, %p187
      %p189 = scmp.ne.s32.totalorder %s178, %s179
      %p190 = scmp.eq.s32.totalorder %s24, 0
      %p191 = por %p189, %p190
      %p192 = scmp.ne.s32.totalorder %s178, %s179
      %p193 = scmp.eq.s32.totalorder %s25, 1
      %p194 = por %p192, %p193
      %p196 = scmp.ne.s32.totalorder %s179, %s195
      %p197 = scmp.eq.s32.totalorder %s25, 0
      %p198 = por %p196, %p197
      %p199 = scmp.le.s32.totalorder 1, %s19
      %p200 = scmp.lt.s32.totalorder %s19, 3
      %p201 = pnand %p199, %p200
      %p202 = pneg %p201
      // Predicated region
      $region9: #{tpu_custom_call.1} parent=5 // pred_check
        _
      $region10: #{tpu_custom_call.1} parent=5 // pred_check_branch
        %204 = sbr.rel (%p201) target = $region12
      $region11: #{tpu_custom_call.1} parent=5 // pred_region
        %s205 = ssub.s32 %s19, 1
        // Predicated region
        $region13: #{tpu_custom_call.1} parent=11 // pred_check
          %p206 = pneg %p66
        $region14: #{tpu_custom_call.1} parent=11 // pred_check_branch
          %208 = sbr.rel (%p206) target = $region16
        $region15: #{tpu_custom_call.1} parent=11 // pred_region
          _
        $region16: #{tpu_custom_call.1} parent=11 // pred_fallthru
          _
        // Predicated region
        $region17: #{tpu_custom_call.1} parent=11 // pred_check
          %p209 = pneg %p139
        $region18: #{tpu_custom_call.1} parent=11 // pred_check_branch
          %211 = sbr.rel (%p209) target = $region20
        $region19: #{tpu_custom_call.1} parent=11 // pred_region
          _
        $region20: #{tpu_custom_call.1} parent=11 // pred_fallthru
          _
      $region12: #{tpu_custom_call.1} parent=5 // pred_fallthru
        _
      %p212 = scmp.lt.s32.totalorder %s19, 2
      // Predicated region
      $region21: #{tpu_custom_call.1} parent=5 // pred_check
        %p213 = pneg %p212
      $region22: #{tpu_custom_call.1} parent=5 // pred_check_branch
        %215 = sbr.rel (%p213) target = $region24
      $region23: #{tpu_custom_call.1} parent=5 // pred_region
        // Predicated region
        $region25: #{tpu_custom_call.1} parent=23 // pred_check
          %p216 = pneg %p39
        $region26: #{tpu_custom_call.1} parent=23 // pred_check_branch
          %218 = sbr.rel (%p216) target = $region28
        $region27: #{tpu_custom_call.1} parent=23 // pred_region
          %s219 = smul.u32 16, %s19
          %p220 = scmp.lt.s32.totalorder %s219, 31
          %s221 = scalar_select %p220, %s219, 31
          %s222 = smul.addr %s221, 4
          %s223 = scalar_lea.vmem %s0, %s222
          %s224 = smul.u32 16, %s19
        $region28: #{tpu_custom_call.1} parent=23 // pred_fallthru
          _
        // Predicated region
        $region29: #{tpu_custom_call.1} parent=23 // pred_check
          %p225 = pneg %p86
        $region30: #{tpu_custom_call.1} parent=23 // pred_check_branch
          %227 = sbr.rel (%p225) target = $region32
        $region31: #{tpu_custom_call.1} parent=23 // pred_region
          %s228 = smul.u32 16, %s19
          %p229 = scmp.lt.s32.totalorder %s228, 31
          %s230 = scalar_select %p229, %s228, 31
          %s231 = smul.addr %s230, 8
          %s232 = scalar_lea.vmem %s2, %s231
          %s233 = smul.u32 16, %s19
        $region32: #{tpu_custom_call.1} parent=23 // pred_fallthru
          _
        // Predicated region
        $region33: #{tpu_custom_call.1} parent=23 // pred_check
          %p234 = pneg %p112
        $region34: #{tpu_custom_call.1} parent=23 // pred_check_branch
          %236 = sbr.rel (%p234) target = $region36
        $region35: #{tpu_custom_call.1} parent=23 // pred_region
          %s237 = smul.u32 16, %s19
          %p238 = scmp.lt.s32.totalorder %s237, 31
          %s239 = scalar_select %p238, %s237, 31
          %s240 = smul.addr %s239, 8
          %s241 = scalar_lea.vmem %s3, %s240
          %s242 = smul.u32 16, %s19
        $region36: #{tpu_custom_call.1} parent=23 // pred_fallthru
          _
      $region24: #{tpu_custom_call.1} parent=5 // pred_fallthru
        _
      %p243 = scmp.le.s32.totalorder 1, %s19
      %p244 = scmp.lt.s32.totalorder %s19, 3
      %p245 = pnand %p243, %p244
      %p246 = pneg %p245
      // Predicated region
      $region37: #{tpu_custom_call.1} parent=5 // pred_check
        _
      $region38: #{tpu_custom_call.1} parent=5 // pred_check_branch
        %248 = sbr.rel (%p245) target = $region40
      $region39: #{tpu_custom_call.1} parent=5 // pred_region
        %s249 = ssub.s32 %s19, 1
        %s250 = smul.u32 16, %s24
        %p251 = scmp.lt.s32.totalorder %s250, 31
        %s252 = scalar_select %p251, %s250, 31
        %s253 = smul.addr %s252, 4
        %s254 = scalar_lea.vmem %s0, %s253
        %p255 = pneg %p45
        %p256 = pneg %p42
        %p257 = pneg %p66
        %p258 = pneg %p63
        %s259 = smul.u32 16, %s24
        %p260 = scmp.lt.s32.totalorder %s259, 31
        %s261 = scalar_select %p260, %s259, 31
        %s262 = smul.addr %s261, 8
        %s263 = scalar_lea.vmem %s2, %s262
        %p264 = pneg %p92
        %p265 = pneg %p89
        %s266 = smul.u32 16, %s24
        %p267 = scmp.lt.s32.totalorder %s266, 31
        %s268 = scalar_select %p267, %s266, 31
        %s269 = smul.addr %s268, 8
        %s270 = scalar_lea.vmem %s3, %s269
        %p271 = pneg %p118
        %p272 = pneg %p115
        %p273 = pneg %p139
        %p274 = pneg %p136
        %p275 = pneg %p165
        %p276 = pneg %p162
        %s277 = sand.u32 %s152, 1
        %s278 = scalar_lea.sflag [#allocation3], %s277
        %s279 = sand.u32 %s152, 1
        %s280 = smul.addr %s279, 128
        %s281 = scalar_lea.vmem [#allocation2], %s280
        %p282 = pneg %p191
        %p283 = pneg %p188
        %s284 = sand.u32 %s178, 1
        %s285 = scalar_lea.sflag [#allocation5], %s284
        %s286 = sand.u32 %s178, 1
        %s287 = smul.addr %s286, 128
        %s288 = scalar_lea.vmem [#allocation4], %s287
        %s289 = smul.u32 16, %s24
        %p290 = scmp.lt.s32.totalorder %s289, 31
        %s291 = scalar_select %p290, %s289, 31
        %s292 = smul.addr %s291, 4
        %s293 = scalar_lea.vmem %s0, %s292
        %s294 = smul.u32 16, %s24
        %s295 = smul.u32 16, %s24
        %p296 = scmp.lt.s32.totalorder %s295, 31
        %s297 = scalar_select %p296, %s295, 31
        %s298 = smul.addr %s297, 8
        %s299 = scalar_lea.vmem %s2, %s298
        %s300 = smul.u32 16, %s24
        %s301 = smul.u32 16, %s24
        %p302 = scmp.lt.s32.totalorder %s301, 31
        %s303 = scalar_select %p302, %s301, 31
        %s304 = smul.addr %s303, 8
        %s305 = scalar_lea.vmem %s3, %s304
        %s306 = smul.u32 16, %s24
        %s307 = smul.u32 16, %s24
        %s308 = smul.u32 16, %s24
        %v310 = vld [vmem:[%s293] sm:$0xf]
        %v311 = vld [vmem:[%s293 + $0x4] sm:$0xf]
        %v312 = vld [vmem:[%s293 + $0x8] sm:$0xf]
        %v313 = vld [vmem:[%s293 + $0xc] sm:$0xf]
        %v314 = vld [vmem:[%s293 + $0x10] sm:$0xf]
        %v315 = vld [vmem:[%s293 + $0x14] sm:$0xf]
        %v316 = vld [vmem:[%s293 + $0x18] sm:$0xf]
        %v317 = vld [vmem:[%s293 + $0x1c] sm:$0xf]
        %v318 = vld [vmem:[%s293 + $0x20] sm:$0xf]
        %v319 = vld [vmem:[%s293 + $0x24] sm:$0xf]
        %v320 = vld [vmem:[%s293 + $0x28] sm:$0xf]
        %v321 = vld [vmem:[%s293 + $0x2c] sm:$0xf]
        %v322 = vld [vmem:[%s293 + $0x30] sm:$0xf]
        %v323 = vld [vmem:[%s293 + $0x34] sm:$0xf]
        %v324 = vld [vmem:[%s293 + $0x38] sm:$0xf]
        %v325 = vld [vmem:[%s293 + $0x3c] sm:$0xf]
        %v326 = vld [vmem:[%s1] sm:$0xff]
        %v327 = vld [vmem:[%s1 + $0x8] sm:$0xff]
        %v328 = vld [vmem:[%s1 + $0x10] sm:$0xff]
        %v329 = vld [vmem:[%s1 + $0x18] sm:$0xff]
        %v346 = vunpack.c.l.b16 %v310
        %v347 = vunpack.c.l.b16 %v311
        %v348 = vunpack.c.l.b16 %v312
        %v349 = vunpack.c.l.b16 %v313
        %v350 = vunpack.c.l.b16 %v314
        %v351 = vunpack.c.l.b16 %v315
        %v352 = vunpack.c.l.b16 %v316
        %v353 = vunpack.c.l.b16 %v317
        %v354 = vunpack.c.l.b16 %v318
        %v355 = vunpack.c.l.b16 %v319
        %v356 = vunpack.c.l.b16 %v320
        %v357 = vunpack.c.l.b16 %v321
        %v358 = vunpack.c.l.b16 %v322
        %v359 = vunpack.c.l.b16 %v323
        %v360 = vunpack.c.l.b16 %v324
        %v361 = vunpack.c.l.b16 %v325
        %v362 = vpack.c.b16 %v347, %v346
        %v363 = vpack.c.b16 %v349, %v348
        %v364 = vpack.c.b16 %v351, %v350
        %v365 = vpack.c.b16 %v353, %v352
        %v366 = vpack.c.b16 %v355, %v354
        %v367 = vpack.c.b16 %v357, %v356
        %v368 = vpack.c.b16 %v359, %v358
        %v369 = vpack.c.b16 %v361, %v360
        %v374 = vunpack.c.l.b16 %v326
        %v375 = vunpack.c.h.b16 %v326
        %v376 = vunpack.c.l.b16 %v327
        %v377 = vunpack.c.h.b16 %v327
        %v378 = vunpack.c.l.b16 %v328
        %v379 = vunpack.c.h.b16 %v328
        %v380 = vunpack.c.l.b16 %v329
        %v381 = vunpack.c.h.b16 %v329
        %v382 = vpack.c.b16 %v376, %v374
        %v383 = vpack.c.b16 %v377, %v375
        %v384 = vpack.c.b16 %v380, %v378
        %v385 = vpack.c.b16 %v381, %v379
        %vm390 = vcmask 261120
        %v392 = vsel %vm390, %v362, 0
        %v395 = vsel %vm390, %v363, 0
        %v398 = vsel %vm390, %v364, 0
        %v401 = vsel %vm390, %v365, 0
        %v404 = vsel %vm390, %v366, 0
        %v407 = vsel %vm390, %v367, 0
        %v410 = vsel %vm390, %v368, 0
        %v413 = vsel %vm390, %v369, 0
        %415 = vmatpush.bf16.msra.mxu0 0
        %416 = vmatpush.bf16.msra.mxu0 0
        %417 = vmatpush.bf16.msra.mxu0 0
        %418 = vmatpush.bf16.msra.mxu0 0
        %419 = vmatpush.bf16.msra.mxu0 0
        %420 = vmatpush.bf16.msra.mxu0 0
        %421 = vmatpush.bf16.msra.mxu0 %v384
        %422 = vmatpush.bf16.msra.mxu0 %v382
        %423 = vmatmul.bf16.gmra.mxu0 %v392
        %v424 = vpop.f32.mrf.mxu0
        %v425 = vadd.f32 0.0, %v424
        %v426 = vpop.f32.mrf.mxu0
        %v427 = vadd.f32 0.0, %v426
        %428 = vmatmul.bf16.gmra.mxu0 %v395
        %v429 = vpop.f32.mrf.mxu0
        %v430 = vadd.f32 0.0, %v429
        %v431 = vpop.f32.mrf.mxu0
        %v432 = vadd.f32 0.0, %v431
        %433 = vmatmul.bf16.gmra.mxu0 %v398
        %v434 = vpop.f32.mrf.mxu0
        %v435 = vadd.f32 0.0, %v434
        %v436 = vpop.f32.mrf.mxu0
        %v437 = vadd.f32 0.0, %v436
        %438 = vmatmul.bf16.gmra.mxu0 %v401
        %v439 = vpop.f32.mrf.mxu0
        %v440 = vadd.f32 0.0, %v439
        %v441 = vpop.f32.mrf.mxu0
        %v442 = vadd.f32 0.0, %v441
        %443 = vmatmul.bf16.gmra.mxu0 %v404
        %v444 = vpop.f32.mrf.mxu0
        %v445 = vadd.f32 0.0, %v444
        %v446 = vpop.f32.mrf.mxu0
        %v447 = vadd.f32 0.0, %v446
        %448 = vmatmul.bf16.gmra.mxu0 %v407
        %v449 = vpop.f32.mrf.mxu0
        %v450 = vadd.f32 0.0, %v449
        %v451 = vpop.f32.mrf.mxu0
        %v452 = vadd.f32 0.0, %v451
        %453 = vmatmul.bf16.gmra.mxu0 %v410
        %v454 = vpop.f32.mrf.mxu0
        %v455 = vadd.f32 0.0, %v454
        %v456 = vpop.f32.mrf.mxu0
        %v457 = vadd.f32 0.0, %v456
        %458 = vmatmul.bf16.gmra.mxu0 %v413
        %v459 = vpop.f32.mrf.mxu0
        %v460 = vadd.f32 0.0, %v459
        %v461 = vpop.f32.mrf.mxu0
        %v462 = vadd.f32 0.0, %v461
        %463 = vdwg.mxu0
        %464 = vmatpush.bf16.msra.mxu0 0
        %465 = vmatpush.bf16.msra.mxu0 0
        %466 = vmatpush.bf16.msra.mxu0 0
        %467 = vmatpush.bf16.msra.mxu0 0
        %468 = vmatpush.bf16.msra.mxu0 0
        %469 = vmatpush.bf16.msra.mxu0 0
        %470 = vmatpush.bf16.msra.mxu0 %v385
        %471 = vmatpush.bf16.msra.mxu0 %v383
        %472 = vmatmul.bf16.gmra.mxu0 %v392
        %v473 = vpop.f32.mrf.mxu0
        %v474 = vadd.f32 0.0, %v473
        %v475 = vpop.f32.mrf.mxu0
        %v476 = vadd.f32 0.0, %v475
        %477 = vmatmul.bf16.gmra.mxu0 %v395
        %v478 = vpop.f32.mrf.mxu0
        %v479 = vadd.f32 0.0, %v478
        %v480 = vpop.f32.mrf.mxu0
        %v481 = vadd.f32 0.0, %v480
        %482 = vmatmul.bf16.gmra.mxu0 %v398
        %v483 = vpop.f32.mrf.mxu0
        %v484 = vadd.f32 0.0, %v483
        %v485 = vpop.f32.mrf.mxu0
        %v486 = vadd.f32 0.0, %v485
        %487 = vmatmul.bf16.gmra.mxu0 %v401
        %v488 = vpop.f32.mrf.mxu0
        %v489 = vadd.f32 0.0, %v488
        %v490 = vpop.f32.mrf.mxu0
        %v491 = vadd.f32 0.0, %v490
        %492 = vmatmul.bf16.gmra.mxu0 %v404
        %v493 = vpop.f32.mrf.mxu0
        %v494 = vadd.f32 0.0, %v493
        %v495 = vpop.f32.mrf.mxu0
        %v496 = vadd.f32 0.0, %v495
        %497 = vmatmul.bf16.gmra.mxu0 %v407
        %v498 = vpop.f32.mrf.mxu0
        %v499 = vadd.f32 0.0, %v498
        %v500 = vpop.f32.mrf.mxu0
        %v501 = vadd.f32 0.0, %v500
        %502 = vmatmul.bf16.gmra.mxu0 %v410
        %v503 = vpop.f32.mrf.mxu0
        %v504 = vadd.f32 0.0, %v503
        %v505 = vpop.f32.mrf.mxu0
        %v506 = vadd.f32 0.0, %v505
        %507 = vmatmul.bf16.gmra.mxu0 %v413
        %v508 = vpop.f32.mrf.mxu0
        %v509 = vadd.f32 0.0, %v508
        %v510 = vpop.f32.mrf.mxu0
        %v511 = vadd.f32 0.0, %v510
        %512 = vdwg.mxu0
        %v513 = vld [vmem:[%s305] sm:$0xff]
        %v514 = vld [vmem:[%s305 + $0x8] sm:$0xff]
        %v515 = vld [vmem:[%s305 + $0x10] sm:$0xff]
        %v516 = vld [vmem:[%s305 + $0x18] sm:$0xff]
        %v517 = vld [vmem:[%s305 + $0x20] sm:$0xff]
        %v518 = vld [vmem:[%s305 + $0x28] sm:$0xff]
        %v519 = vld [vmem:[%s305 + $0x30] sm:$0xff]
        %v520 = vld [vmem:[%s305 + $0x38] sm:$0xff]
        %v521 = vld [vmem:[%s305 + $0x40] sm:$0xff]
        %v522 = vld [vmem:[%s305 + $0x48] sm:$0xff]
        %v523 = vld [vmem:[%s305 + $0x50] sm:$0xff]
        %v524 = vld [vmem:[%s305 + $0x58] sm:$0xff]
        %v525 = vld [vmem:[%s305 + $0x60] sm:$0xff]
        %v526 = vld [vmem:[%s305 + $0x68] sm:$0xff]
        %v527 = vld [vmem:[%s305 + $0x70] sm:$0xff]
        %v528 = vld [vmem:[%s305 + $0x78] sm:$0xff]
        %530 = vset.pattern.permute.xlu0 0
        %531 = vperm.xlu0 %530, %v513
        %v532 = vpop.permute.xlu0 %531
        %535 = vset.pattern.permute.xlu0 0
        %536 = vperm.xlu0 %535, %v514
        %v537 = vpop.permute.xlu0 %536
        %540 = vset.pattern.permute.xlu0 0
        %541 = vperm.xlu0 %540, %v515
        %v542 = vpop.permute.xlu0 %541
        %545 = vset.pattern.permute.xlu0 0
        %546 = vperm.xlu0 %545, %v516
        %v547 = vpop.permute.xlu0 %546
        %550 = vset.pattern.permute.xlu0 0
        %551 = vperm.xlu0 %550, %v517
        %v552 = vpop.permute.xlu0 %551
        %555 = vset.pattern.permute.xlu0 0
        %556 = vperm.xlu0 %555, %v518
        %v557 = vpop.permute.xlu0 %556
        %560 = vset.pattern.permute.xlu0 0
        %561 = vperm.xlu0 %560, %v519
        %v562 = vpop.permute.xlu0 %561
        %565 = vset.pattern.permute.xlu0 0
        %566 = vperm.xlu0 %565, %v520
        %v567 = vpop.permute.xlu0 %566
        %570 = vset.pattern.permute.xlu0 0
        %571 = vperm.xlu0 %570, %v521
        %v572 = vpop.permute.xlu0 %571
        %575 = vset.pattern.permute.xlu0 0
        %576 = vperm.xlu0 %575, %v522
        %v577 = vpop.permute.xlu0 %576
        %580 = vset.pattern.permute.xlu0 0
        %581 = vperm.xlu0 %580, %v523
        %v582 = vpop.permute.xlu0 %581
        %585 = vset.pattern.permute.xlu0 0
        %586 = vperm.xlu0 %585, %v524
        %v587 = vpop.permute.xlu0 %586
        %590 = vset.pattern.permute.xlu0 0
        %591 = vperm.xlu0 %590, %v525
        %v592 = vpop.permute.xlu0 %591
        %595 = vset.pattern.permute.xlu0 0
        %596 = vperm.xlu0 %595, %v526
        %v597 = vpop.permute.xlu0 %596
        %600 = vset.pattern.permute.xlu0 0
        %601 = vperm.xlu0 %600, %v527
        %v602 = vpop.permute.xlu0 %601
        %605 = vset.pattern.permute.xlu0 0
        %606 = vperm.xlu0 %605, %v528
        %v607 = vpop.permute.xlu0 %606
        %v609 = vmul.f32 %v425, %v532
        %v610 = vmul.f32 %v427, %v537
        %v611 = vmul.f32 %v430, %v542
        %v612 = vmul.f32 %v432, %v547
        %v613 = vmul.f32 %v435, %v552
        %v614 = vmul.f32 %v437, %v557
        %v615 = vmul.f32 %v440, %v562
        %v616 = vmul.f32 %v442, %v567
        %v617 = vmul.f32 %v445, %v572
        %v618 = vmul.f32 %v447, %v577
        %v619 = vmul.f32 %v450, %v582
        %v620 = vmul.f32 %v452, %v587
        %v621 = vmul.f32 %v455, %v592
        %v622 = vmul.f32 %v457, %v597
        %v623 = vmul.f32 %v460, %v602
        %v624 = vmul.f32 %v462, %v607
        %v625 = vmax.f32 %v609, 0.0
        %v626 = vmax.f32 %v610, 0.0
        %v627 = vmax.f32 %v611, 0.0
        %v628 = vmax.f32 %v612, 0.0
        %v629 = vmax.f32 %v613, 0.0
        %v630 = vmax.f32 %v614, 0.0
        %v631 = vmax.f32 %v615, 0.0
        %v632 = vmax.f32 %v616, 0.0
        %v633 = vmax.f32 %v617, 0.0
        %v634 = vmax.f32 %v618, 0.0
        %v635 = vmax.f32 %v619, 0.0
        %v636 = vmax.f32 %v620, 0.0
        %v637 = vmax.f32 %v621, 0.0
        %v638 = vmax.f32 %v622, 0.0
        %v639 = vmax.f32 %v623, 0.0
        %v640 = vmax.f32 %v624, 0.0
        %641 = vst [vmem:[%s281] sm:$0xff] %v625
        %642 = vst [vmem:[%s281 + $0x8] sm:$0xff] %v626
        %643 = vst [vmem:[%s281 + $0x10] sm:$0xff] %v627
        %644 = vst [vmem:[%s281 + $0x18] sm:$0xff] %v628
        %645 = vst [vmem:[%s281 + $0x20] sm:$0xff] %v629
        %646 = vst [vmem:[%s281 + $0x28] sm:$0xff] %v630
        %647 = vst [vmem:[%s281 + $0x30] sm:$0xff] %v631
        %648 = vst [vmem:[%s281 + $0x38] sm:$0xff] %v632
        %649 = vst [vmem:[%s281 + $0x40] sm:$0xff] %v633
        %650 = vst [vmem:[%s281 + $0x48] sm:$0xff] %v634
        %651 = vst [vmem:[%s281 + $0x50] sm:$0xff] %v635
        %652 = vst [vmem:[%s281 + $0x58] sm:$0xff] %v636
        %653 = vst [vmem:[%s281 + $0x60] sm:$0xff] %v637
        %654 = vst [vmem:[%s281 + $0x68] sm:$0xff] %v638
        %655 = vst [vmem:[%s281 + $0x70] sm:$0xff] %v639
        %656 = vst [vmem:[%s281 + $0x78] sm:$0xff] %v640
        %v657 = vld [vmem:[%s299] sm:$0xff]
        %v658 = vld [vmem:[%s299 + $0x8] sm:$0xff]
        %v659 = vld [vmem:[%s299 + $0x10] sm:$0xff]
        %v660 = vld [vmem:[%s299 + $0x18] sm:$0xff]
        %v661 = vld [vmem:[%s299 + $0x20] sm:$0xff]
        %v662 = vld [vmem:[%s299 + $0x28] sm:$0xff]
        %v663 = vld [vmem:[%s299 + $0x30] sm:$0xff]
        %v664 = vld [vmem:[%s299 + $0x38] sm:$0xff]
        %v665 = vld [vmem:[%s299 + $0x40] sm:$0xff]
        %v666 = vld [vmem:[%s299 + $0x48] sm:$0xff]
        %v667 = vld [vmem:[%s299 + $0x50] sm:$0xff]
        %v668 = vld [vmem:[%s299 + $0x58] sm:$0xff]
        %v669 = vld [vmem:[%s299 + $0x60] sm:$0xff]
        %v670 = vld [vmem:[%s299 + $0x68] sm:$0xff]
        %v671 = vld [vmem:[%s299 + $0x70] sm:$0xff]
        %v672 = vld [vmem:[%s299 + $0x78] sm:$0xff]
        %674 = vset.pattern.permute.xlu0 0
        %675 = vperm.xlu0 %674, %v657
        %v676 = vpop.permute.xlu0 %675
        %679 = vset.pattern.permute.xlu0 0
        %680 = vperm.xlu0 %679, %v658
        %v681 = vpop.permute.xlu0 %680
        %684 = vset.pattern.permute.xlu0 0
        %685 = vperm.xlu0 %684, %v659
        %v686 = vpop.permute.xlu0 %685
        %689 = vset.pattern.permute.xlu0 0
        %690 = vperm.xlu0 %689, %v660
        %v691 = vpop.permute.xlu0 %690
        %694 = vset.pattern.permute.xlu0 0
        %695 = vperm.xlu0 %694, %v661
        %v696 = vpop.permute.xlu0 %695
        %699 = vset.pattern.permute.xlu0 0
        %700 = vperm.xlu0 %699, %v662
        %v701 = vpop.permute.xlu0 %700
        %704 = vset.pattern.permute.xlu0 0
        %705 = vperm.xlu0 %704, %v663
        %v706 = vpop.permute.xlu0 %705
        %709 = vset.pattern.permute.xlu0 0
        %710 = vperm.xlu0 %709, %v664
        %v711 = vpop.permute.xlu0 %710
        %714 = vset.pattern.permute.xlu0 0
        %715 = vperm.xlu0 %714, %v665
        %v716 = vpop.permute.xlu0 %715
        %719 = vset.pattern.permute.xlu0 0
        %720 = vperm.xlu0 %719, %v666
        %v721 = vpop.permute.xlu0 %720
        %724 = vset.pattern.permute.xlu0 0
        %725 = vperm.xlu0 %724, %v667
        %v726 = vpop.permute.xlu0 %725
        %729 = vset.pattern.permute.xlu0 0
        %730 = vperm.xlu0 %729, %v668
        %v731 = vpop.permute.xlu0 %730
        %734 = vset.pattern.permute.xlu0 0
        %735 = vperm.xlu0 %734, %v669
        %v736 = vpop.permute.xlu0 %735
        %739 = vset.pattern.permute.xlu0 0
        %740 = vperm.xlu0 %739, %v670
        %v741 = vpop.permute.xlu0 %740
        %744 = vset.pattern.permute.xlu0 0
        %745 = vperm.xlu0 %744, %v671
        %v746 = vpop.permute.xlu0 %745
        %749 = vset.pattern.permute.xlu0 0
        %750 = vperm.xlu0 %749, %v672
        %v751 = vpop.permute.xlu0 %750
        %v753 = vmul.f32 %v474, %v676
        %v754 = vmul.f32 %v476, %v681
        %v755 = vmul.f32 %v479, %v686
        %v756 = vmul.f32 %v481, %v691
        %v757 = vmul.f32 %v484, %v696
        %v758 = vmul.f32 %v486, %v701
        %v759 = vmul.f32 %v489, %v706
        %v760 = vmul.f32 %v491, %v711
        %v761 = vmul.f32 %v494, %v716
        %v762 = vmul.f32 %v496, %v721
        %v763 = vmul.f32 %v499, %v726
        %v764 = vmul.f32 %v501, %v731
        %v765 = vmul.f32 %v504, %v736
        %v766 = vmul.f32 %v506, %v741
        %v767 = vmul.f32 %v509, %v746
        %v768 = vmul.f32 %v511, %v751
        %v769 = vmul.f32 %v753, %v753
        %v770 = vmul.f32 %v754, %v754
        %v771 = vmul.f32 %v755, %v755
        %v772 = vmul.f32 %v756, %v756
        %v773 = vmul.f32 %v757, %v757
        %v774 = vmul.f32 %v758, %v758
        %v775 = vmul.f32 %v759, %v759
        %v776 = vmul.f32 %v760, %v760
        %v777 = vmul.f32 %v761, %v761
        %v778 = vmul.f32 %v762, %v762
        %v779 = vmul.f32 %v763, %v763
        %v780 = vmul.f32 %v764, %v764
        %v781 = vmul.f32 %v765, %v765
        %v782 = vmul.f32 %v766, %v766
        %v783 = vmul.f32 %v767, %v767
        %v784 = vmul.f32 %v768, %v768
        %v785 = vld [vmem:[%s4] sm:$0xff]
        %v786 = vld [vmem:[%s4 + $0x8] sm:$0xff]
        %v787 = vld [vmem:[%s4 + $0x10] sm:$0xff]
        %v788 = vld [vmem:[%s4 + $0x18] sm:$0xff]
        %v789 = vld [vmem:[%s4 + $0x20] sm:$0xff]
        %v790 = vld [vmem:[%s4 + $0x28] sm:$0xff]
        %v791 = vld [vmem:[%s4 + $0x30] sm:$0xff]
        %v792 = vld [vmem:[%s4 + $0x38] sm:$0xff]
        %v793 = vld [vmem:[%s4 + $0x40] sm:$0xff]
        %v794 = vld [vmem:[%s4 + $0x48] sm:$0xff]
        %v795 = vld [vmem:[%s4 + $0x50] sm:$0xff]
        %v796 = vld [vmem:[%s4 + $0x58] sm:$0xff]
        %v797 = vld [vmem:[%s4 + $0x60] sm:$0xff]
        %v798 = vld [vmem:[%s4 + $0x68] sm:$0xff]
        %v799 = vld [vmem:[%s4 + $0x70] sm:$0xff]
        %v800 = vld [vmem:[%s4 + $0x78] sm:$0xff]
        %801 = vmatpush.msra.mxu0 %v800
        %802 = vmatpush.msra.mxu0 %v799
        %803 = vmatpush.msra.mxu0 %v798
        %804 = vmatpush.msra.mxu0 %v797
        %805 = vmatpush.msra.mxu0 %v796
        %806 = vmatpush.msra.mxu0 %v795
        %807 = vmatpush.msra.mxu0 %v794
        %808 = vmatpush.msra.mxu0 %v793
        %809 = vmatpush.msra.mxu0 %v792
        %810 = vmatpush.msra.mxu0 %v791
        %811 = vmatpush.msra.mxu0 %v790
        %812 = vmatpush.msra.mxu0 %v789
        %813 = vmatpush.msra.mxu0 %v788
        %814 = vmatpush.msra.mxu0 %v787
        %815 = vmatpush.msra.mxu0 %v786
        %816 = vmatpush.msra.mxu0 %v785
        %817 = vmatmul.f32.gmra.mxu0 %v769
        %v818 = vpop.f32.mrf.mxu0
        %v819 = vadd.f32 0.0, %v818
        %820 = vmatmul.f32.gmra.mxu0 %v770
        %v821 = vpop.f32.mrf.mxu0
        %v822 = vadd.f32 0.0, %v821
        %823 = vmatmul.f32.gmra.mxu0 %v771
        %v824 = vpop.f32.mrf.mxu0
        %v825 = vadd.f32 0.0, %v824
        %826 = vmatmul.f32.gmra.mxu0 %v772
        %v827 = vpop.f32.mrf.mxu0
        %v828 = vadd.f32 0.0, %v827
        %829 = vmatmul.f32.gmra.mxu0 %v773
        %v830 = vpop.f32.mrf.mxu0
        %v831 = vadd.f32 0.0, %v830
        %832 = vmatmul.f32.gmra.mxu0 %v774
        %v833 = vpop.f32.mrf.mxu0
        %v834 = vadd.f32 0.0, %v833
        %835 = vmatmul.f32.gmra.mxu0 %v775
        %v836 = vpop.f32.mrf.mxu0
        %v837 = vadd.f32 0.0, %v836
        %838 = vmatmul.f32.gmra.mxu0 %v776
        %v839 = vpop.f32.mrf.mxu0
        %v840 = vadd.f32 0.0, %v839
        %841 = vmatmul.f32.gmra.mxu0 %v777
        %v842 = vpop.f32.mrf.mxu0
        %v843 = vadd.f32 0.0, %v842
        %844 = vmatmul.f32.gmra.mxu0 %v778
        %v845 = vpop.f32.mrf.mxu0
        %v846 = vadd.f32 0.0, %v845
        %847 = vmatmul.f32.gmra.mxu0 %v779
        %v848 = vpop.f32.mrf.mxu0
        %v849 = vadd.f32 0.0, %v848
        %850 = vmatmul.f32.gmra.mxu0 %v780
        %v851 = vpop.f32.mrf.mxu0
        %v852 = vadd.f32 0.0, %v851
        %853 = vmatmul.f32.gmra.mxu0 %v781
        %v854 = vpop.f32.mrf.mxu0
        %v855 = vadd.f32 0.0, %v854
        %856 = vmatmul.f32.gmra.mxu0 %v782
        %v857 = vpop.f32.mrf.mxu0
        %v858 = vadd.f32 0.0, %v857
        %859 = vmatmul.f32.gmra.mxu0 %v783
        %v860 = vpop.f32.mrf.mxu0
        %v861 = vadd.f32 0.0, %v860
        %862 = vmatmul.f32.gmra.mxu0 %v784
        %v863 = vpop.f32.mrf.mxu0
        %v864 = vadd.f32 0.0, %v863
        %865 = vdwg.mxu0
        %v866 = vmax.f32 %v819, 1e-24
        %v867 = vmax.f32 %v822, 1e-24
        %v868 = vmax.f32 %v825, 1e-24
        %v869 = vmax.f32 %v828, 1e-24
        %v870 = vmax.f32 %v831, 1e-24
        %v871 = vmax.f32 %v834, 1e-24
        %v872 = vmax.f32 %v837, 1e-24
        %v873 = vmax.f32 %v840, 1e-24
        %v874 = vmax.f32 %v843, 1e-24
        %v875 = vmax.f32 %v846, 1e-24
        %v876 = vmax.f32 %v849, 1e-24
        %v877 = vmax.f32 %v852, 1e-24
        %v878 = vmax.f32 %v855, 1e-24
        %v879 = vmax.f32 %v858, 1e-24
        %v880 = vmax.f32 %v861, 1e-24
        %v881 = vmax.f32 %v864, 1e-24
        %v882 = vrcp.pop %v866
        %v883 = vrcp.pop %v867
        %v884 = vrcp.pop %v868
        %v885 = vrcp.pop %v869
        %v886 = vrcp.pop %v870
        %v887 = vrcp.pop %v871
        %v888 = vrcp.pop %v872
        %v889 = vrcp.pop %v873
        %v890 = vrcp.pop %v874
        %v891 = vrcp.pop %v875
        %v892 = vrcp.pop %v876
        %v893 = vrcp.pop %v877
        %v894 = vrcp.pop %v878
        %v895 = vrcp.pop %v879
        %v896 = vrcp.pop %v880
        %v897 = vrcp.pop %v881
        %v898 = vmul.f32 %v769, %v882
        %v899 = vmul.f32 %v770, %v883
        %v900 = vmul.f32 %v771, %v884
        %v901 = vmul.f32 %v772, %v885
        %v902 = vmul.f32 %v773, %v886
        %v903 = vmul.f32 %v774, %v887
        %v904 = vmul.f32 %v775, %v888
        %v905 = vmul.f32 %v776, %v889
        %v906 = vmul.f32 %v777, %v890
        %v907 = vmul.f32 %v778, %v891
        %v908 = vmul.f32 %v779, %v892
        %v909 = vmul.f32 %v780, %v893
        %v910 = vmul.f32 %v781, %v894
        %v911 = vmul.f32 %v782, %v895
        %v912 = vmul.f32 %v783, %v896
        %v913 = vmul.f32 %v784, %v897
        %v914 = vlaneseq
        %v915 = vand.u32 %v914, 127
        %vm916 = vcmp.lt.s32.totalorder %v915, 32
        %v917 = vsel %vm916, %v898, -1e+30
        %v918 = vsel %vm916, %v899, -1e+30
        %v919 = vsel %vm916, %v900, -1e+30
        %v920 = vsel %vm916, %v901, -1e+30
        %v921 = vsel %vm916, %v902, -1e+30
        %v922 = vsel %vm916, %v903, -1e+30
        %v923 = vsel %vm916, %v904, -1e+30
        %v924 = vsel %vm916, %v905, -1e+30
        %v925 = vsel %vm916, %v906, -1e+30
        %v926 = vsel %vm916, %v907, -1e+30
        %v927 = vsel %vm916, %v908, -1e+30
        %v928 = vsel %vm916, %v909, -1e+30
        %v929 = vsel %vm916, %v910, -1e+30
        %v930 = vsel %vm916, %v911, -1e+30
        %v931 = vsel %vm916, %v912, -1e+30
        %v932 = vsel %vm916, %v913, -1e+30
        %933 = vmax.xlane.f32.xlu0 %v917
        %v934 = vpop.xlane.xlu0 %933
        %935 = vmax.xlane.f32.xlu0 %v918
        %v936 = vpop.xlane.xlu0 %935
        %937 = vmax.xlane.f32.xlu0 %v919
        %v938 = vpop.xlane.xlu0 %937
        %939 = vmax.xlane.f32.xlu0 %v920
        %v940 = vpop.xlane.xlu0 %939
        %941 = vmax.xlane.f32.xlu0 %v921
        %v942 = vpop.xlane.xlu0 %941
        %943 = vmax.xlane.f32.xlu0 %v922
        %v944 = vpop.xlane.xlu0 %943
        %945 = vmax.xlane.f32.xlu0 %v923
        %v946 = vpop.xlane.xlu0 %945
        %947 = vmax.xlane.f32.xlu0 %v924
        %v948 = vpop.xlane.xlu0 %947
        %949 = vmax.xlane.f32.xlu0 %v925
        %v950 = vpop.xlane.xlu0 %949
        %951 = vmax.xlane.f32.xlu0 %v926
        %v952 = vpop.xlane.xlu0 %951
        %953 = vmax.xlane.f32.xlu0 %v927
        %v954 = vpop.xlane.xlu0 %953
        %955 = vmax.xlane.f32.xlu0 %v928
        %v956 = vpop.xlane.xlu0 %955
        %957 = vmax.xlane.f32.xlu0 %v929
        %v958 = vpop.xlane.xlu0 %957
        %959 = vmax.xlane.f32.xlu0 %v930
        %v960 = vpop.xlane.xlu0 %959
        %961 = vmax.xlane.f32.xlu0 %v931
        %v962 = vpop.xlane.xlu0 %961
        %963 = vmax.xlane.f32.xlu0 %v932
        %v964 = vpop.xlane.xlu0 %963
        %v965 = vsub.f32 %v917, %v934
        %v966 = vsub.f32 %v918, %v936
        %v967 = vsub.f32 %v919, %v938
        %v968 = vsub.f32 %v920, %v940
        %v969 = vsub.f32 %v921, %v942
        %v970 = vsub.f32 %v922, %v944
        %v971 = vsub.f32 %v923, %v946
        %v972 = vsub.f32 %v924, %v948
        %v973 = vsub.f32 %v925, %v950
        %v974 = vsub.f32 %v926, %v952
        %v975 = vsub.f32 %v927, %v954
        %v976 = vsub.f32 %v928, %v956
        %v977 = vsub.f32 %v929, %v958
        %v978 = vsub.f32 %v930, %v960
        %v979 = vsub.f32 %v931, %v962
        %v980 = vsub.f32 %v932, %v964
        %v981 = vmul.f32 %v965, 1.442695
        %v982 = vpow.pop %v981
        %v983 = vmul.f32 %v966, 1.442695
        %v984 = vpow.pop %v983
        %v985 = vmul.f32 %v967, 1.442695
        %v986 = vpow.pop %v985
        %v987 = vmul.f32 %v968, 1.442695
        %v988 = vpow.pop %v987
        %v989 = vmul.f32 %v969, 1.442695
        %v990 = vpow.pop %v989
        %v991 = vmul.f32 %v970, 1.442695
        %v992 = vpow.pop %v991
        %v993 = vmul.f32 %v971, 1.442695
        %v994 = vpow.pop %v993
        %v995 = vmul.f32 %v972, 1.442695
        %v996 = vpow.pop %v995
        %v997 = vmul.f32 %v973, 1.442695
        %v998 = vpow.pop %v997
        %v999 = vmul.f32 %v974, 1.442695
        %v1000 = vpow.pop %v999
        %v1001 = vmul.f32 %v975, 1.442695
        %v1002 = vpow.pop %v1001
        %v1003 = vmul.f32 %v976, 1.442695
        %v1004 = vpow.pop %v1003
        %v1005 = vmul.f32 %v977, 1.442695
        %v1006 = vpow.pop %v1005
        %v1007 = vmul.f32 %v978, 1.442695
        %v1008 = vpow.pop %v1007
        %v1009 = vmul.f32 %v979, 1.442695
        %v1010 = vpow.pop %v1009
        %v1011 = vmul.f32 %v980, 1.442695
        %v1012 = vpow.pop %v1011
        %1013 = vadd.xlane.f32.xlu0 %v982
        %v1014 = vpop.xlane.xlu0 %1013
        %1015 = vadd.xlane.f32.xlu0 %v984
        %v1016 = vpop.xlane.xlu0 %1015
        %1017 = vadd.xlane.f32.xlu0 %v986
        %v1018 = vpop.xlane.xlu0 %1017
        %1019 = vadd.xlane.f32.xlu0 %v988
        %v1020 = vpop.xlane.xlu0 %1019
        %1021 = vadd.xlane.f32.xlu0 %v990
        %v1022 = vpop.xlane.xlu0 %1021
        %1023 = vadd.xlane.f32.xlu0 %v992
        %v1024 = vpop.xlane.xlu0 %1023
        %1025 = vadd.xlane.f32.xlu0 %v994
        %v1026 = vpop.xlane.xlu0 %1025
        %1027 = vadd.xlane.f32.xlu0 %v996
        %v1028 = vpop.xlane.xlu0 %1027
        %1029 = vadd.xlane.f32.xlu0 %v998
        %v1030 = vpop.xlane.xlu0 %1029
        %1031 = vadd.xlane.f32.xlu0 %v1000
        %v1032 = vpop.xlane.xlu0 %1031
        %1033 = vadd.xlane.f32.xlu0 %v1002
        %v1034 = vpop.xlane.xlu0 %1033
        %1035 = vadd.xlane.f32.xlu0 %v1004
        %v1036 = vpop.xlane.xlu0 %1035
        %1037 = vadd.xlane.f32.xlu0 %v1006
        %v1038 = vpop.xlane.xlu0 %1037
        %1039 = vadd.xlane.f32.xlu0 %v1008
        %v1040 = vpop.xlane.xlu0 %1039
        %1041 = vadd.xlane.f32.xlu0 %v1010
        %v1042 = vpop.xlane.xlu0 %1041
        %1043 = vadd.xlane.f32.xlu0 %v1012
        %v1044 = vpop.xlane.xlu0 %1043
        %v1045 = vrcp.pop %v1014
        %v1046 = vrcp.pop %v1016
        %v1047 = vrcp.pop %v1018
        %v1048 = vrcp.pop %v1020
        %v1049 = vrcp.pop %v1022
        %v1050 = vrcp.pop %v1024
        %v1051 = vrcp.pop %v1026
        %v1052 = vrcp.pop %v1028
        %v1053 = vrcp.pop %v1030
        %v1054 = vrcp.pop %v1032
        %v1055 = vrcp.pop %v1034
        %v1056 = vrcp.pop %v1036
        %v1057 = vrcp.pop %v1038
        %v1058 = vrcp.pop %v1040
        %v1059 = vrcp.pop %v1042
        %v1060 = vrcp.pop %v1044
        %v1061 = vmul.f32 %v982, %v1045
        %v1062 = vmul.f32 %v984, %v1046
        %v1063 = vmul.f32 %v986, %v1047
        %v1064 = vmul.f32 %v988, %v1048
        %v1065 = vmul.f32 %v990, %v1049
        %v1066 = vmul.f32 %v992, %v1050
        %v1067 = vmul.f32 %v994, %v1051
        %v1068 = vmul.f32 %v996, %v1052
        %v1069 = vmul.f32 %v998, %v1053
        %v1070 = vmul.f32 %v1000, %v1054
        %v1071 = vmul.f32 %v1002, %v1055
        %v1072 = vmul.f32 %v1004, %v1056
        %v1073 = vmul.f32 %v1006, %v1057
        %v1074 = vmul.f32 %v1008, %v1058
        %v1075 = vmul.f32 %v1010, %v1059
        %v1076 = vmul.f32 %v1012, %v1060
        %1077 = vst [vmem:[%s288] sm:$0xff] %v1061
        %1078 = vst [vmem:[%s288 + $0x8] sm:$0xff] %v1062
        %1079 = vst [vmem:[%s288 + $0x10] sm:$0xff] %v1063
        %1080 = vst [vmem:[%s288 + $0x18] sm:$0xff] %v1064
        %1081 = vst [vmem:[%s288 + $0x20] sm:$0xff] %v1065
        %1082 = vst [vmem:[%s288 + $0x28] sm:$0xff] %v1066
        %1083 = vst [vmem:[%s288 + $0x30] sm:$0xff] %v1067
        %1084 = vst [vmem:[%s288 + $0x38] sm:$0xff] %v1068
        %1085 = vst [vmem:[%s288 + $0x40] sm:$0xff] %v1069
        %1086 = vst [vmem:[%s288 + $0x48] sm:$0xff] %v1070
        %1087 = vst [vmem:[%s288 + $0x50] sm:$0xff] %v1071
        %1088 = vst [vmem:[%s288 + $0x58] sm:$0xff] %v1072
        %1089 = vst [vmem:[%s288 + $0x60] sm:$0xff] %v1073
        %1090 = vst [vmem:[%s288 + $0x68] sm:$0xff] %v1074
        %1091 = vst [vmem:[%s288 + $0x70] sm:$0xff] %v1075
        %1092 = vst [vmem:[%s288 + $0x78] sm:$0xff] %v1076
        %s1093 = sand.u32 %s152, 1
        %s1094 = scalar_lea.sflag [#allocation3], %s1093
        %s1095 = sand.u32 %s152, 1
        %s1096 = smul.addr %s1095, 128
        %s1097 = scalar_lea.vmem [#allocation2], %s1096
        %s1098 = sand.u32 %s178, 1
        %s1099 = scalar_lea.sflag [#allocation5], %s1098
        %s1100 = sand.u32 %s178, 1
        %s1101 = smul.addr %s1100, 128
        %s1102 = scalar_lea.vmem [#allocation4], %s1101
        // Predicated region
        $region41: #{tpu_custom_call.1} parent=39 // pred_check
          %p1103 = pneg %p162
        $region42: #{tpu_custom_call.1} parent=39 // pred_check_branch
          %1105 = sbr.rel (%p1103) target = $region44
        $region43: #{tpu_custom_call.1} parent=39 // pred_region
          %s1106 = smul.u32 16, %s24
          %1108 = vsyncadd %s1094, 0
          %s1109 = smul.addr %s1106, 8
          %s1110 = scalar_lea.hbm %s5, %s1109
          %s1111 = sshll.u32 %s1097, 4
          %s1112 = int_to_ptr.vmem [resolvable:$true] %s1111
          %s1113 = sshll.u32 %s1110, 4
          %s1114 = int_to_ptr.hbm [resolvable:$true] %s1113
          %1119 = dma.vmem_to_hbm [thread:$0]  %s1112, 2048, %s1114, %s1094, 128, 128, 8
        $region44: #{tpu_custom_call.1} parent=39 // pred_fallthru
          _
        // Predicated region
        $region45: #{tpu_custom_call.1} parent=39 // pred_check
          %p1120 = pneg %p188
        $region46: #{tpu_custom_call.1} parent=39 // pred_check_branch
          %1122 = sbr.rel (%p1120) target = $region48
        $region47: #{tpu_custom_call.1} parent=39 // pred_region
          %s1123 = smul.u32 16, %s24
          %1125 = vsyncadd %s1099, 0
          %s1126 = smul.addr %s1123, 8
          %s1127 = scalar_lea.hbm %s6, %s1126
          %s1128 = sshll.u32 %s1102, 4
          %s1129 = int_to_ptr.vmem [resolvable:$true] %s1128
          %s1130 = sshll.u32 %s1127, 4
          %s1131 = int_to_ptr.hbm [resolvable:$true] %s1130
          %1136 = dma.vmem_to_hbm [thread:$0]  %s1129, 2048, %s1131, %s1099, 128, 128, 8
        $region48: #{tpu_custom_call.1} parent=39 // pred_fallthru
          _
      $region40: #{tpu_custom_call.1} parent=5 // pred_fallthru
        _
      %p1137 = scmp.le.s32.totalorder 2, %s19
      // Predicated region
      $region49: #{tpu_custom_call.1} parent=5 // pred_check
        %p1138 = pneg %p1137
      $region50: #{tpu_custom_call.1} parent=5 // pred_check_branch
        %1140 = sbr.rel (%p1138) target = $region52
      $region51: #{tpu_custom_call.1} parent=5 // pred_region
        %s1141 = ssub.s32 %s19, 2
        // Predicated region
        $region53: #{tpu_custom_call.1} parent=51 // pred_check
          %p1142 = pneg %p168
        $region54: #{tpu_custom_call.1} parent=51 // pred_check_branch
          %1144 = sbr.rel (%p1142) target = $region56
        $region55: #{tpu_custom_call.1} parent=51 // pred_region
          %s1145 = sand.u32 %s153, 1
          %s1146 = scalar_lea.sflag [#allocation3], %s1145
          %s1147 = sand.u32 %s153, 1
          %s1148 = smul.addr %s1147, 128
          %s1149 = scalar_lea.vmem [#allocation2], %s1148
          %1151 = dma.done %s1146, 2048
        $region56: #{tpu_custom_call.1} parent=51 // pred_fallthru
          _
        // Predicated region
        $region57: #{tpu_custom_call.1} parent=51 // pred_check
          %p1152 = pneg %p194
        $region58: #{tpu_custom_call.1} parent=51 // pred_check_branch
          %1154 = sbr.rel (%p1152) target = $region60
        $region59: #{tpu_custom_call.1} parent=51 // pred_region
          %s1155 = sand.u32 %s179, 1
          %s1156 = scalar_lea.sflag [#allocation5], %s1155
          %s1157 = sand.u32 %s179, 1
          %s1158 = smul.addr %s1157, 128
          %s1159 = scalar_lea.vmem [#allocation4], %s1158
          %1161 = dma.done %s1156, 2048
        $region60: #{tpu_custom_call.1} parent=51 // pred_fallthru
          _
      $region52: #{tpu_custom_call.1} parent=5 // pred_fallthru
        _
    $region6: #{tpu_custom_call.1} parent=1 // loop_footer
      %s23 = sadd.s32 1, %s19
    $region7: #{tpu_custom_call.1} parent=1 // loop_footer_branch
      %18 = sbr.rel target = $region3
    $region8: #{tpu_custom_call.1} parent=1 // loop_exit
      _
    %1162 = vsyncpa [#allocation3], 1
    %s1163 = scalar_lea.sflag [#allocation3], 1
    %1164 = vsyncpa %s1163, 1
    %1165 = vsyncpa [#allocation5], 1
    %s1166 = scalar_lea.sflag [#allocation5], 1
    %1167 = vsyncpa %s1166, 1

</llo_original>
